<compile_context>
chip_gen: v7x
topology: tpu7x:2x2x1
jax: 0.10.0
libtpu: 0.0.40
codegen_flags: <defaults>
</compile_context>

<pallas_src>
import jax
import jax.numpy as jnp
from jax.experimental import pallas as pl
from jax.experimental.pallas import tpu as pltpu


NEG_SLOPE = 0.01
_FAST_PATH_BYTES = 256 * 1024          # below this, launch/wrapper overhead dominates
_TARGET_BLOCK_BYTES = 2 * 1024 * 1024  # ~2 MiB blocks: near roofline knee, safe everywhere


def _leaky_relu_kernel(x_ref, o_ref):
    x = x_ref[...]
    # max(x, 0.01*x) == leaky_relu(x) for 0 < slope < 1 (mul + max: 2 VPU ops, no select).
    o_ref[...] = jnp.maximum(x, x * NEG_SLOPE)


def _round_up(x: int, m: int) -> int:
    return ((x + m - 1) // m) * m


def _sublane_multiple(dtype) -> int:
    # Rows per packed sublane group: 8 for 32-bit, 16 for 16-bit, 32 for 8-bit dtypes.
    return max(8, 32 // jnp.dtype(dtype).itemsize)


def _pick_lanes(n: int) -> int:
    """Widest lane-dense last dim (multiple of 128) dividing n with >= 8 rows."""
    for lanes in (2048, 1024, 512, 256, 128):
        if n % lanes == 0 and n // lanes >= 8:
            return lanes
    return 128  # n is always a multiple of 128 when we reach the kernel path


def _leaky_relu_2d(x2d: jax.Array, rows: int, lanes: int, dtype) -> jax.Array:
    itemsize = jnp.dtype(dtype).itemsize
    sub = _sublane_multiple(dtype)

    # Block rows targeting ~2 MiB per block, rounded to the dtype's sublane multiple.
    tile_rows = max(sub, (_TARGET_BLOCK_BYTES // (lanes * itemsize)) // sub * sub)
    if rows <= tile_rows:
        # Whole array would fit in one block: still split into >= 2 blocks (when
        # possible) so the "parallel" grid axis feeds both of v7x's TensorCores.
        tile_rows = _round_up(pl.cdiv(rows, 2), sub) if rows > sub else rows

    grid = (pl.cdiv(rows, tile_rows),)  # partial last block is masked by Pallas

    return pl.pallas_call(
        _leaky_relu_kernel,
        out_shape=jax.ShapeDtypeStruct((rows, lanes), dtype),
        grid_spec=pltpu.PrefetchScalarGridSpec(
            num_scalar_prefetch=0,
            grid=grid,
            in_specs=[pl.BlockSpec((tile_rows, lanes), lambda i: (i, 0))],
            out_specs=pl.BlockSpec((tile_rows, lanes), lambda i: (i, 0)),
        ),
        compiler_params=pltpu.CompilerParams(
            dimension_semantics=("parallel",),
        ),
        cost_estimate=pl.CostEstimate(
            flops=2 * rows * lanes,
            transcendentals=0,
            bytes_accessed=2 * rows * lanes * itemsize,
        ),
        # Elementwise, same shape/dtype: write the result in place over the
        # temporary 2-D slab -> halves peak HBM footprint, enables donation.
        input_output_aliases={0: 0},
    )(x2d)


def leaky_relu(x: jax.Array) -> jax.Array:
    """LeakyReLU (negative_slope=0.01) via a Pallas TPU kernel (forward pass)."""
    dtype = x.dtype
    assert jnp.issubdtype(dtype, jnp.floating), (
        "leaky_relu: floating dtypes only (got %s)" % dtype
    )

    n = x.size
    itemsize = jnp.dtype(dtype).itemsize
    # Tiny inputs: kernel-launch + wrapper overhead dominates -> plain jnp fast path.
    if n == 0 or n * itemsize < _FAST_PATH_BYTES:
        return jnp.maximum(x, x * NEG_SLOPE)

    flat = x.reshape(-1)
    n_bulk = (n // 128) * 128
    tail = n - n_bulk  # 0..127 elements

    bulk = flat if tail == 0 else flat[:n_bulk]
    lanes = _pick_lanes(n_bulk)
    rows = n_bulk // lanes
    out_flat = _leaky_relu_2d(bulk.reshape(rows, lanes), rows, lanes, dtype).reshape(-1)

    if tail:
        # <=127-element remainder handled with plain jnp (no full-array pad/slice).
        t = flat[n_bulk:]
        out_flat = jnp.concatenate([out_flat, jnp.maximum(t, t * NEG_SLOPE)])

    return out_flat.reshape(x.shape)


if __name__ == "__main__":
    key = jax.random.PRNGKey(0)
    k1, k2, k3, k4 = jax.random.split(key, 4)

    def ref(v):
        return jnp.where(v < 0, v * NEG_SLOPE, v)

    # 1) Module-sized small input (NCHW: batch=2, channels=4, spatial=16x16).
    #    8 KiB -> fast path (plain jnp), as recommended by the perf review.
    x_small = jax.random.normal(k1, (2, 4, 16, 16), dtype=jnp.float32)
    y_small = jax.block_until_ready(leaky_relu(x_small))
    assert y_small.shape == x_small.shape and y_small.dtype == x_small.dtype
    assert jnp.array_equal(y_small, ref(x_small))

    # 2) Larger 128-aligned f32 input -> Pallas kernel path (2-step parallel grid).
    x_big = jax.random.normal(k2, (8, 8, 32, 128), dtype=jnp.float32)  # 1 MiB
    y_big = jax.block_until_ready(leaky_relu(x_big))
    assert y_big.shape == x_big.shape and y_big.dtype == x_big.dtype
    assert jnp.array_equal(y_big, ref(x_big))

    # 3) Non-128-aligned f32 input -> kernel on the aligned bulk + jnp tail.
    x_odd = jax.random.normal(k3, (523, 513), dtype=jnp.float32)  # 268299 elems
    y_odd = jax.block_until_ready(leaky_relu(x_odd))
    assert y_odd.shape == x_odd.shape and y_odd.dtype == x_odd.dtype
    assert jnp.array_equal(y_odd, ref(x_odd))

    # 4) bf16 input -> kernel path with 16-row sublane-aligned blocks.
    x_bf16 = jax.random.normal(k4, (4, 16, 64, 128), dtype=jnp.bfloat16)  # 1 MiB
    y_bf16 = jax.block_until_ready(leaky_relu(x_bf16))
    assert y_bf16.shape == x_bf16.shape and y_bf16.dtype == x_bf16.dtype
    assert jnp.allclose(y_bf16.astype(jnp.float32), ref(x_bf16).astype(jnp.float32),
                        rtol=1e-2, atol=1e-6)

    # TODO(synk): backward() of the PyTorch module is not implemented (forward only).
    print("KERNEL_OK")
</pallas_src>

<mosaic_0001>
module attributes {stable_mosaic.version = 11 : i64} {
  func.func @_leaky_relu_kernel(%arg0: i32, %arg1: memref<64x2048xf32, #tpu.memory_space<vmem>>, %arg2: memref<64x2048xf32, #tpu.memory_space<vmem>>) attributes {dimension_semantics = [#tpu.dimension_semantics<parallel>], iteration_bounds = array<i64: 2>, scalar_prefetch = 0 : i64, scratch_operands = 0 : i64, tpu.core_type = #tpu.core_type<tc>, window_params = [{transform_indices = @transform_0, window_bounds = array<i64: 64, 2048>}, {transform_indices = @transform_1, window_bounds = array<i64: 64, 2048>}]} {
    %c0 = arith.constant 0 : index
    %c0_0 = arith.constant 0 : index
    %0 = vector.load %arg1[%c0, %c0_0] : memref<64x2048xf32, #tpu.memory_space<vmem>>, vector<64x2048xf32>
    %cst = arith.constant 0.00999999977 : f32
    %1 = vector.broadcast %cst : f32 to vector<64x2048xf32>
    %2 = arith.mulf %0, %1 : vector<64x2048xf32>
    %3 = arith.maximumf %0, %2 : vector<64x2048xf32>
    %c0_1 = arith.constant 0 : index
    %c0_2 = arith.constant 0 : index
    %4 = vector.load %arg2[%c0_1, %c0_2] : memref<64x2048xf32, #tpu.memory_space<vmem>>, vector<64x2048xf32>
    tpu.vector_store %arg2[%c0_1, %c0_2], %3 {strides = array<i32>} : memref<64x2048xf32, #tpu.memory_space<vmem>>, vector<64x2048xf32>,
    return
  }
  func.func @transform_0(%arg0: i32) -> (i32, i32) {
    %c0_i32 = arith.constant 0 : i32
    %c0_i32_0 = arith.constant 0 : i32
    return %arg0, %c0_i32 : i32, i32
  }
  func.func @transform_1(%arg0: i32) -> (i32, i32) {
    %c0_i32 = arith.constant 0 : i32
    %c0_i32_0 = arith.constant 0 : i32
    return %arg0, %c0_i32 : i32, i32
  }
}

</mosaic_0001>

<llo_original>
// kernel: tpu_custom_call.1
$region0: #{tpu_custom_call.1}
  #allocation0 [shape = 'u32[]', space=smem, size = 0x4, offset = 0x4, fixed_abs, tag = 'smem constant byte address 0x4 - core index']
  #allocation1 [shape = 'u32[144,128]{1,0:T(1,128)}', space=vmem, size = 0x12000, scoped, tag = 'internal scratch']
  %s0 = inlined_call_operand.hbm [shape: f32[128,2048], index: 0, kind: input, shape index: {}, may-alias: {0,1}]
  %s1 = inlined_call_operand.hbm [shape: f32[128,2048], index: 1, kind: output, shape index: {}, may-alias: {0,1}]
  %s2 = sld [smem:[#allocation0]]
  $region41: #{tpu_custom_call.1} parent=0
    _
  %s4 = ssub.s32 1, %s2
  %s5 = scalar_select 0, %s4, %s2
  $region1: #{tpu_custom_call.1} parent=0
    #allocation2 [shape = 'u8[1048576]{0}', space=vmem, size = 0x100000, scoped, tag = 'input window, operand 0']
    #allocation3 [shape = 's32[2]{0}', space=sflag, size = 0x8, scoped, tag = 'scoped memory for tpu_custom_call.1']
    #allocation4 [shape = 's32[2]{0}', space=sflag, size = 0x8, scoped, tag = 'scoped memory for tpu_custom_call.1']
    #allocation5 [shape = 'u8[1048576]{0}', space=vmem, size = 0x100000, scoped, tag = 'output window, operand 0']
    %6 = vsyncpa [#allocation3], 0
    %s7 = scalar_lea.sflag [#allocation3], 1
    %8 = vsyncpa %s7, 0
    %9 = vsyncpa [#allocation4], 0
    %s10 = scalar_lea.sflag [#allocation4], 1
    %11 = vsyncpa %s10, 0
    loop: start=0, step=1, limit=4
    $region2: #{tpu_custom_call.1} parent=1 // loop_pre_header
      _
    $region3: #{tpu_custom_call.1} parent=1 // loop_header
      %s13 = sphi 0, %s17
      %p14 = scmp.ge.s32.totalorder %s13, 4
      %s23 = sphi 0, %s25
      %s26 = sphi 0, %s23
      %s27 = sphi 0, %s26
      %s43 = sphi 0, %s27
      %s49 = sphi 0, %s51
      %s52 = sphi 0, %s49
      %s53 = sphi 0, %s52
      %s69 = sphi 0, %s53
    $region4: #{tpu_custom_call.1} parent=1 // loop_header_branch
      %16 = sbr.rel (%p14) target = $region8
    $region5: #{tpu_custom_call.1} parent=1 // loop_body
      %s18 = ssub.s32 %s13, 1
      %s19 = ssub.s32 %s13, 2
      %s20 = sadd.s32 %s13, 1
      %s21 = ssub.s32 %s13, %s20
      %p22 = scmp.eq.s32.totalorder %s21, 0
      %s24 = sadd.s32 %s23, 1
      %s25 = scalar_select %p22, %s23, %s24
      %p28 = pneg %p22
      %p29 = scmp.eq.s32.totalorder %s13, 1
      %p30 = por %p28, %p29
      %p31 = scmp.ne.s32.totalorder %s23, %s26
      %p32 = scmp.eq.s32.totalorder %s13, 0
      %p33 = por %p31, %p32
      %p34 = scmp.ne.s32.totalorder %s23, %s26
      %p35 = scmp.eq.s32.totalorder %s18, 1
      %p36 = por %p34, %p35
      %p37 = scmp.ne.s32.totalorder %s26, %s27
      %p38 = scmp.eq.s32.totalorder %s18, 0
      %p39 = por %p37, %p38
      %p40 = scmp.ne.s32.totalorder %s26, %s27
      %p41 = scmp.eq.s32.totalorder %s19, 1
      %p42 = por %p40, %p41
      %p44 = scmp.ne.s32.totalorder %s27, %s43
      %p45 = scmp.eq.s32.totalorder %s19, 0
      %p46 = por %p44, %p45
      %s47 = ssub.s32 %s13, %s20
      %p48 = scmp.eq.s32.totalorder %s47, 0
      %s50 = sadd.s32 %s49, 1
      %s51 = scalar_select %p48, %s49, %s50
      %p54 = pneg %p48
      %p55 = scmp.eq.s32.totalorder %s13, 1
      %p56 = por %p54, %p55
      %p57 = scmp.ne.s32.totalorder %s49, %s52
      %p58 = scmp.eq.s32.totalorder %s13, 0
      %p59 = por %p57, %p58
      %p60 = scmp.ne.s32.totalorder %s49, %s52
      %p61 = scmp.eq.s32.totalorder %s18, 1
      %p62 = por %p60, %p61
      %p63 = scmp.ne.s32.totalorder %s52, %s53
      %p64 = scmp.eq.s32.totalorder %s18, 0
      %p65 = por %p63, %p64
      %p66 = scmp.ne.s32.totalorder %s52, %s53
      %p67 = scmp.eq.s32.totalorder %s19, 1
      %p68 = por %p66, %p67
      %p70 = scmp.ne.s32.totalorder %s53, %s69
      %p71 = scmp.eq.s32.totalorder %s19, 0
      %p72 = por %p70, %p71
      %p73 = scmp.le.s32.totalorder 1, %s13
      %p74 = scmp.lt.s32.totalorder %s13, 3
      %p75 = pnand %p73, %p74
      %p76 = pneg %p75
      // Predicated region
      $region9: #{tpu_custom_call.1} parent=5 // pred_check
        _
      $region10: #{tpu_custom_call.1} parent=5 // pred_check_branch
        %78 = sbr.rel (%p75) target = $region12
      $region11: #{tpu_custom_call.1} parent=5 // pred_region
        %s79 = ssub.s32 %s13, 1
      $region12: #{tpu_custom_call.1} parent=5 // pred_fallthru
        _
      %p80 = scmp.lt.s32.totalorder %s13, 2
      // Predicated region
      $region13: #{tpu_custom_call.1} parent=5 // pred_check
        %p81 = pneg %p80
      $region14: #{tpu_custom_call.1} parent=5 // pred_check_branch
        %83 = sbr.rel (%p81) target = $region16
      $region15: #{tpu_custom_call.1} parent=5 // pred_region
        // Predicated region
        $region17: #{tpu_custom_call.1} parent=15 // pred_check
          %p84 = pneg %p33
        $region18: #{tpu_custom_call.1} parent=15 // pred_check_branch
          %86 = sbr.rel (%p84) target = $region20
        $region19: #{tpu_custom_call.1} parent=15 // pred_region
          %s87 = sand.u32 %s23, 1
          %s88 = scalar_lea.sflag [#allocation3], %s87
          %s89 = sand.u32 %s23, 1
          %s90 = smul.addr %s89, 1024
          %s91 = scalar_lea.vmem [#allocation2], %s90
          %s92 = smul.u32 8, %s13
          %s94 = ssub.s32 16384, 16384
          %95 = vsyncadd %s88, %s94
          %s96 = smul.addr %s92, 16
          %s97 = smul.addr %s96, 128
          %s98 = scalar_lea.hbm %s0, %s97
          %s99 = sshll.u32 %s91, 4
          %s100 = int_to_ptr.vmem [resolvable:$true] %s99
          %105 = dma.hbm_to_vmem [thread:$0]  %s98, 16384, %s100, %s88, 2048, 2048, 128
        $region20: #{tpu_custom_call.1} parent=15 // pred_fallthru
          _
      $region16: #{tpu_custom_call.1} parent=5 // pred_fallthru
        _
      %p106 = scmp.le.s32.totalorder 1, %s13
      %p107 = scmp.lt.s32.totalorder %s13, 3
      %p108 = pnand %p106, %p107
      %p109 = pneg %p108
      // Predicated region
      $region21: #{tpu_custom_call.1} parent=5 // pred_check
        _
      $region22: #{tpu_custom_call.1} parent=5 // pred_check_branch
        %111 = sbr.rel (%p108) target = $region24
      $region23: #{tpu_custom_call.1} parent=5 // pred_region
        %s112 = ssub.s32 %s13, 1
        %s113 = sand.u32 %s26, 1
        %s114 = scalar_lea.sflag [#allocation3], %s113
        %s115 = sand.u32 %s26, 1
        %s116 = smul.addr %s115, 1024
        %s117 = scalar_lea.vmem [#allocation2], %s116
        // Predicated region
        $region25: #{tpu_custom_call.1} parent=23 // pred_check
          %p118 = pneg %p39
        $region26: #{tpu_custom_call.1} parent=23 // pred_check_branch
          %120 = sbr.rel (%p118) target = $region28
        $region27: #{tpu_custom_call.1} parent=23 // pred_region
          %121 = dma.done %s114, 16384
        $region28: #{tpu_custom_call.1} parent=23 // pred_fallthru
          _
        %s122 = sand.u32 %s26, 1
        %s123 = scalar_lea.sflag [#allocation3], %s122
        %s124 = sand.u32 %s26, 1
        %s125 = smul.addr %s124, 1024
        %s126 = scalar_lea.vmem [#allocation2], %s125
        %p127 = pneg %p39
        %p128 = pneg %p36
        %p129 = pneg %p65
        %p130 = pneg %p62
        %s131 = sand.u32 %s52, 1
        %s132 = scalar_lea.sflag [#allocation4], %s131
        %s133 = sand.u32 %s52, 1
        %s134 = smul.addr %s133, 1024
        %s135 = scalar_lea.vmem [#allocation5], %s134
        %s136 = smul.u32 8, %s18
        %s137 = smul.u32 8, %s18
        %v138 = vld [vmem:[%s117] sm:$0xff]
        %v139 = vld [vmem:[%s117 + $0x8] sm:$0xff]
        %v140 = vld [vmem:[%s117 + $0x10] sm:$0xff]
        %v141 = vld [vmem:[%s117 + $0x18] sm:$0xff]
        %v142 = vld [vmem:[%s117 + $0x20] sm:$0xff]
        %v143 = vld [vmem:[%s117 + $0x28] sm:$0xff]
        %v144 = vld [vmem:[%s117 + $0x30] sm:$0xff]
        %v145 = vld [vmem:[%s117 + $0x38] sm:$0xff]
        %v146 = vld [vmem:[%s117 + $0x40] sm:$0xff]
        %v147 = vld [vmem:[%s117 + $0x48] sm:$0xff]
        %v148 = vld [vmem:[%s117 + $0x50] sm:$0xff]
        %v149 = vld [vmem:[%s117 + $0x58] sm:$0xff]
        %v150 = vld [vmem:[%s117 + $0x60] sm:$0xff]
        %v151 = vld [vmem:[%s117 + $0x68] sm:$0xff]
        %v152 = vld [vmem:[%s117 + $0x70] sm:$0xff]
        %v153 = vld [vmem:[%s117 + $0x78] sm:$0xff]
        %v154 = vld [vmem:[%s117 + $0x80] sm:$0xff]
        %v155 = vld [vmem:[%s117 + $0x88] sm:$0xff]
        %v156 = vld [vmem:[%s117 + $0x90] sm:$0xff]
        %v157 = vld [vmem:[%s117 + $0x98] sm:$0xff]
        %v158 = vld [vmem:[%s117 + $0xa0] sm:$0xff]
        %v159 = vld [vmem:[%s117 + $0xa8] sm:$0xff]
        %v160 = vld [vmem:[%s117 + $0xb0] sm:$0xff]
        %v161 = vld [vmem:[%s117 + $0xb8] sm:$0xff]
        %v162 = vld [vmem:[%s117 + $0xc0] sm:$0xff]
        %v163 = vld [vmem:[%s117 + $0xc8] sm:$0xff]
        %v164 = vld [vmem:[%s117 + $0xd0] sm:$0xff]
        %v165 = vld [vmem:[%s117 + $0xd8] sm:$0xff]
        %v166 = vld [vmem:[%s117 + $0xe0] sm:$0xff]
        %v167 = vld [vmem:[%s117 + $0xe8] sm:$0xff]
        %v168 = vld [vmem:[%s117 + $0xf0] sm:$0xff]
        %v169 = vld [vmem:[%s117 + $0xf8] sm:$0xff]
        %v170 = vld [vmem:[%s117 + $0x100] sm:$0xff]
        %v171 = vld [vmem:[%s117 + $0x108] sm:$0xff]
        %v172 = vld [vmem:[%s117 + $0x110] sm:$0xff]
        %v173 = vld [vmem:[%s117 + $0x118] sm:$0xff]
        %v174 = vld [vmem:[%s117 + $0x120] sm:$0xff]
        %v175 = vld [vmem:[%s117 + $0x128] sm:$0xff]
        %v176 = vld [vmem:[%s117 + $0x130] sm:$0xff]
        %v177 = vld [vmem:[%s117 + $0x138] sm:$0xff]
        %v178 = vld [vmem:[%s117 + $0x140] sm:$0xff]
        %v179 = vld [vmem:[%s117 + $0x148] sm:$0xff]
        %v180 = vld [vmem:[%s117 + $0x150] sm:$0xff]
        %v181 = vld [vmem:[%s117 + $0x158] sm:$0xff]
        %v182 = vld [vmem:[%s117 + $0x160] sm:$0xff]
        %v183 = vld [vmem:[%s117 + $0x168] sm:$0xff]
        %v184 = vld [vmem:[%s117 + $0x170] sm:$0xff]
        %v185 = vld [vmem:[%s117 + $0x178] sm:$0xff]
        %v186 = vld [vmem:[%s117 + $0x180] sm:$0xff]
        %v187 = vld [vmem:[%s117 + $0x188] sm:$0xff]
        %v188 = vld [vmem:[%s117 + $0x190] sm:$0xff]
        %v189 = vld [vmem:[%s117 + $0x198] sm:$0xff]
        %v190 = vld [vmem:[%s117 + $0x1a0] sm:$0xff]
        %v191 = vld [vmem:[%s117 + $0x1a8] sm:$0xff]
        %v192 = vld [vmem:[%s117 + $0x1b0] sm:$0xff]
        %v193 = vld [vmem:[%s117 + $0x1b8] sm:$0xff]
        %v194 = vld [vmem:[%s117 + $0x1c0] sm:$0xff]
        %v195 = vld [vmem:[%s117 + $0x1c8] sm:$0xff]
        %v196 = vld [vmem:[%s117 + $0x1d0] sm:$0xff]
        %v197 = vld [vmem:[%s117 + $0x1d8] sm:$0xff]
        %v198 = vld [vmem:[%s117 + $0x1e0] sm:$0xff]
        %v199 = vld [vmem:[%s117 + $0x1e8] sm:$0xff]
        %v200 = vld [vmem:[%s117 + $0x1f0] sm:$0xff]
        %v201 = vld [vmem:[%s117 + $0x1f8] sm:$0xff]
        %v202 = vld [vmem:[%s117 + $0x200] sm:$0xff]
        %v203 = vld [vmem:[%s117 + $0x208] sm:$0xff]
        %v204 = vld [vmem:[%s117 + $0x210] sm:$0xff]
        %v205 = vld [vmem:[%s117 + $0x218] sm:$0xff]
        %v206 = vld [vmem:[%s117 + $0x220] sm:$0xff]
        %v207 = vld [vmem:[%s117 + $0x228] sm:$0xff]
        %v208 = vld [vmem:[%s117 + $0x230] sm:$0xff]
        %v209 = vld [vmem:[%s117 + $0x238] sm:$0xff]
        %v210 = vld [vmem:[%s117 + $0x240] sm:$0xff]
        %v211 = vld [vmem:[%s117 + $0x248] sm:$0xff]
        %v212 = vld [vmem:[%s117 + $0x250] sm:$0xff]
        %v213 = vld [vmem:[%s117 + $0x258] sm:$0xff]
        %v214 = vld [vmem:[%s117 + $0x260] sm:$0xff]
        %v215 = vld [vmem:[%s117 + $0x268] sm:$0xff]
        %v216 = vld [vmem:[%s117 + $0x270] sm:$0xff]
        %v217 = vld [vmem:[%s117 + $0x278] sm:$0xff]
        %v218 = vld [vmem:[%s117 + $0x280] sm:$0xff]
        %v219 = vld [vmem:[%s117 + $0x288] sm:$0xff]
        %v220 = vld [vmem:[%s117 + $0x290] sm:$0xff]
        %v221 = vld [vmem:[%s117 + $0x298] sm:$0xff]
        %v222 = vld [vmem:[%s117 + $0x2a0] sm:$0xff]
        %v223 = vld [vmem:[%s117 + $0x2a8] sm:$0xff]
        %v224 = vld [vmem:[%s117 + $0x2b0] sm:$0xff]
        %v225 = vld [vmem:[%s117 + $0x2b8] sm:$0xff]
        %v226 = vld [vmem:[%s117 + $0x2c0] sm:$0xff]
        %v227 = vld [vmem:[%s117 + $0x2c8] sm:$0xff]
        %v228 = vld [vmem:[%s117 + $0x2d0] sm:$0xff]
        %v229 = vld [vmem:[%s117 + $0x2d8] sm:$0xff]
        %v230 = vld [vmem:[%s117 + $0x2e0] sm:$0xff]
        %v231 = vld [vmem:[%s117 + $0x2e8] sm:$0xff]
        %v232 = vld [vmem:[%s117 + $0x2f0] sm:$0xff]
        %v233 = vld [vmem:[%s117 + $0x2f8] sm:$0xff]
        %v234 = vld [vmem:[%s117 + $0x300] sm:$0xff]
        %v235 = vld [vmem:[%s117 + $0x308] sm:$0xff]
        %v236 = vld [vmem:[%s117 + $0x310] sm:$0xff]
        %v237 = vld [vmem:[%s117 + $0x318] sm:$0xff]
        %v238 = vld [vmem:[%s117 + $0x320] sm:$0xff]
        %v239 = vld [vmem:[%s117 + $0x328] sm:$0xff]
        %v240 = vld [vmem:[%s117 + $0x330] sm:$0xff]
        %v241 = vld [vmem:[%s117 + $0x338] sm:$0xff]
        %v242 = vld [vmem:[%s117 + $0x340] sm:$0xff]
        %v243 = vld [vmem:[%s117 + $0x348] sm:$0xff]
        %v244 = vld [vmem:[%s117 + $0x350] sm:$0xff]
        %v245 = vld [vmem:[%s117 + $0x358] sm:$0xff]
        %v246 = vld [vmem:[%s117 + $0x360] sm:$0xff]
        %v247 = vld [vmem:[%s117 + $0x368] sm:$0xff]
        %v248 = vld [vmem:[%s117 + $0x370] sm:$0xff]
        %v249 = vld [vmem:[%s117 + $0x378] sm:$0xff]
        %v250 = vld [vmem:[%s117 + $0x380] sm:$0xff]
        %v251 = vld [vmem:[%s117 + $0x388] sm:$0xff]
        %v252 = vld [vmem:[%s117 + $0x390] sm:$0xff]
        %v253 = vld [vmem:[%s117 + $0x398] sm:$0xff]
        %v254 = vld [vmem:[%s117 + $0x3a0] sm:$0xff]
        %v255 = vld [vmem:[%s117 + $0x3a8] sm:$0xff]
        %v256 = vld [vmem:[%s117 + $0x3b0] sm:$0xff]
        %v257 = vld [vmem:[%s117 + $0x3b8] sm:$0xff]
        %v258 = vld [vmem:[%s117 + $0x3c0] sm:$0xff]
        %v259 = vld [vmem:[%s117 + $0x3c8] sm:$0xff]
        %v260 = vld [vmem:[%s117 + $0x3d0] sm:$0xff]
        %v261 = vld [vmem:[%s117 + $0x3d8] sm:$0xff]
        %v262 = vld [vmem:[%s117 + $0x3e0] sm:$0xff]
        %v263 = vld [vmem:[%s117 + $0x3e8] sm:$0xff]
        %v264 = vld [vmem:[%s117 + $0x3f0] sm:$0xff]
        %v265 = vld [vmem:[%s117 + $0x3f8] sm:$0xff]
        %v266 = vmul.f32 %v138, 0.01
        %v267 = vmul.f32 %v139, 0.01
        %v268 = vmul.f32 %v140, 0.01
        %v269 = vmul.f32 %v141, 0.01
        %v270 = vmul.f32 %v142, 0.01
        %v271 = vmul.f32 %v143, 0.01
        %v272 = vmul.f32 %v144, 0.01
        %v273 = vmul.f32 %v145, 0.01
        %v274 = vmul.f32 %v146, 0.01
        %v275 = vmul.f32 %v147, 0.01
        %v276 = vmul.f32 %v148, 0.01
        %v277 = vmul.f32 %v149, 0.01
        %v278 = vmul.f32 %v150, 0.01
        %v279 = vmul.f32 %v151, 0.01
        %v280 = vmul.f32 %v152, 0.01
        %v281 = vmul.f32 %v153, 0.01
        %v282 = vmul.f32 %v154, 0.01
        %v283 = vmul.f32 %v155, 0.01
        %v284 = vmul.f32 %v156, 0.01
        %v285 = vmul.f32 %v157, 0.01
        %v286 = vmul.f32 %v158, 0.01
        %v287 = vmul.f32 %v159, 0.01
        %v288 = vmul.f32 %v160, 0.01
        %v289 = vmul.f32 %v161, 0.01
        %v290 = vmul.f32 %v162, 0.01
        %v291 = vmul.f32 %v163, 0.01
        %v292 = vmul.f32 %v164, 0.01
        %v293 = vmul.f32 %v165, 0.01
        %v294 = vmul.f32 %v166, 0.01
        %v295 = vmul.f32 %v167, 0.01
        %v296 = vmul.f32 %v168, 0.01
        %v297 = vmul.f32 %v169, 0.01
        %v298 = vmul.f32 %v170, 0.01
        %v299 = vmul.f32 %v171, 0.01
        %v300 = vmul.f32 %v172, 0.01
        %v301 = vmul.f32 %v173, 0.01
        %v302 = vmul.f32 %v174, 0.01
        %v303 = vmul.f32 %v175, 0.01
        %v304 = vmul.f32 %v176, 0.01
        %v305 = vmul.f32 %v177, 0.01
        %v306 = vmul.f32 %v178, 0.01
        %v307 = vmul.f32 %v179, 0.01
        %v308 = vmul.f32 %v180, 0.01
        %v309 = vmul.f32 %v181, 0.01
        %v310 = vmul.f32 %v182, 0.01
        %v311 = vmul.f32 %v183, 0.01
        %v312 = vmul.f32 %v184, 0.01
        %v313 = vmul.f32 %v185, 0.01
        %v314 = vmul.f32 %v186, 0.01
        %v315 = vmul.f32 %v187, 0.01
        %v316 = vmul.f32 %v188, 0.01
        %v317 = vmul.f32 %v189, 0.01
        %v318 = vmul.f32 %v190, 0.01
        %v319 = vmul.f32 %v191, 0.01
        %v320 = vmul.f32 %v192, 0.01
        %v321 = vmul.f32 %v193, 0.01
        %v322 = vmul.f32 %v194, 0.01
        %v323 = vmul.f32 %v195, 0.01
        %v324 = vmul.f32 %v196, 0.01
        %v325 = vmul.f32 %v197, 0.01
        %v326 = vmul.f32 %v198, 0.01
        %v327 = vmul.f32 %v199, 0.01
        %v328 = vmul.f32 %v200, 0.01
        %v329 = vmul.f32 %v201, 0.01
        %v330 = vmul.f32 %v202, 0.01
        %v331 = vmul.f32 %v203, 0.01
        %v332 = vmul.f32 %v204, 0.01
        %v333 = vmul.f32 %v205, 0.01
        %v334 = vmul.f32 %v206, 0.01
        %v335 = vmul.f32 %v207, 0.01
        %v336 = vmul.f32 %v208, 0.01
        %v337 = vmul.f32 %v209, 0.01
        %v338 = vmul.f32 %v210, 0.01
        %v339 = vmul.f32 %v211, 0.01
        %v340 = vmul.f32 %v212, 0.01
        %v341 = vmul.f32 %v213, 0.01
        %v342 = vmul.f32 %v214, 0.01
        %v343 = vmul.f32 %v215, 0.01
        %v344 = vmul.f32 %v216, 0.01
        %v345 = vmul.f32 %v217, 0.01
        %v346 = vmul.f32 %v218, 0.01
        %v347 = vmul.f32 %v219, 0.01
        %v348 = vmul.f32 %v220, 0.01
        %v349 = vmul.f32 %v221, 0.01
        %v350 = vmul.f32 %v222, 0.01
        %v351 = vmul.f32 %v223, 0.01
        %v352 = vmul.f32 %v224, 0.01
        %v353 = vmul.f32 %v225, 0.01
        %v354 = vmul.f32 %v226, 0.01
        %v355 = vmul.f32 %v227, 0.01
        %v356 = vmul.f32 %v228, 0.01
        %v357 = vmul.f32 %v229, 0.01
        %v358 = vmul.f32 %v230, 0.01
        %v359 = vmul.f32 %v231, 0.01
        %v360 = vmul.f32 %v232, 0.01
        %v361 = vmul.f32 %v233, 0.01
        %v362 = vmul.f32 %v234, 0.01
        %v363 = vmul.f32 %v235, 0.01
        %v364 = vmul.f32 %v236, 0.01
        %v365 = vmul.f32 %v237, 0.01
        %v366 = vmul.f32 %v238, 0.01
        %v367 = vmul.f32 %v239, 0.01
        %v368 = vmul.f32 %v240, 0.01
        %v369 = vmul.f32 %v241, 0.01
        %v370 = vmul.f32 %v242, 0.01
        %v371 = vmul.f32 %v243, 0.01
        %v372 = vmul.f32 %v244, 0.01
        %v373 = vmul.f32 %v245, 0.01
        %v374 = vmul.f32 %v246, 0.01
        %v375 = vmul.f32 %v247, 0.01
        %v376 = vmul.f32 %v248, 0.01
        %v377 = vmul.f32 %v249, 0.01
        %v378 = vmul.f32 %v250, 0.01
        %v379 = vmul.f32 %v251, 0.01
        %v380 = vmul.f32 %v252, 0.01
        %v381 = vmul.f32 %v253, 0.01
        %v382 = vmul.f32 %v254, 0.01
        %v383 = vmul.f32 %v255, 0.01
        %v384 = vmul.f32 %v256, 0.01
        %v385 = vmul.f32 %v257, 0.01
        %v386 = vmul.f32 %v258, 0.01
        %v387 = vmul.f32 %v259, 0.01
        %v388 = vmul.f32 %v260, 0.01
        %v389 = vmul.f32 %v261, 0.01
        %v390 = vmul.f32 %v262, 0.01
        %v391 = vmul.f32 %v263, 0.01
        %v392 = vmul.f32 %v264, 0.01
        %v393 = vmul.f32 %v265, 0.01
        %v394 = vmax.f32 %v138, %v266
        %v395 = vmax.f32 %v139, %v267
        %v396 = vmax.f32 %v140, %v268
        %v397 = vmax.f32 %v141, %v269
        %v398 = vmax.f32 %v142, %v270
        %v399 = vmax.f32 %v143, %v271
        %v400 = vmax.f32 %v144, %v272
        %v401 = vmax.f32 %v145, %v273
        %v402 = vmax.f32 %v146, %v274
        %v403 = vmax.f32 %v147, %v275
        %v404 = vmax.f32 %v148, %v276
        %v405 = vmax.f32 %v149, %v277
        %v406 = vmax.f32 %v150, %v278
        %v407 = vmax.f32 %v151, %v279
        %v408 = vmax.f32 %v152, %v280
        %v409 = vmax.f32 %v153, %v281
        %v410 = vmax.f32 %v154, %v282
        %v411 = vmax.f32 %v155, %v283
        %v412 = vmax.f32 %v156, %v284
        %v413 = vmax.f32 %v157, %v285
        %v414 = vmax.f32 %v158, %v286
        %v415 = vmax.f32 %v159, %v287
        %v416 = vmax.f32 %v160, %v288
        %v417 = vmax.f32 %v161, %v289
        %v418 = vmax.f32 %v162, %v290
        %v419 = vmax.f32 %v163, %v291
        %v420 = vmax.f32 %v164, %v292
        %v421 = vmax.f32 %v165, %v293
        %v422 = vmax.f32 %v166, %v294
        %v423 = vmax.f32 %v167, %v295
        %v424 = vmax.f32 %v168, %v296
        %v425 = vmax.f32 %v169, %v297
        %v426 = vmax.f32 %v170, %v298
        %v427 = vmax.f32 %v171, %v299
        %v428 = vmax.f32 %v172, %v300
        %v429 = vmax.f32 %v173, %v301
        %v430 = vmax.f32 %v174, %v302
        %v431 = vmax.f32 %v175, %v303
        %v432 = vmax.f32 %v176, %v304
        %v433 = vmax.f32 %v177, %v305
        %v434 = vmax.f32 %v178, %v306
        %v435 = vmax.f32 %v179, %v307
        %v436 = vmax.f32 %v180, %v308
        %v437 = vmax.f32 %v181, %v309
        %v438 = vmax.f32 %v182, %v310
        %v439 = vmax.f32 %v183, %v311
        %v440 = vmax.f32 %v184, %v312
        %v441 = vmax.f32 %v185, %v313
        %v442 = vmax.f32 %v186, %v314
        %v443 = vmax.f32 %v187, %v315
        %v444 = vmax.f32 %v188, %v316
        %v445 = vmax.f32 %v189, %v317
        %v446 = vmax.f32 %v190, %v318
        %v447 = vmax.f32 %v191, %v319
        %v448 = vmax.f32 %v192, %v320
        %v449 = vmax.f32 %v193, %v321
        %v450 = vmax.f32 %v194, %v322
        %v451 = vmax.f32 %v195, %v323
        %v452 = vmax.f32 %v196, %v324
        %v453 = vmax.f32 %v197, %v325
        %v454 = vmax.f32 %v198, %v326
        %v455 = vmax.f32 %v199, %v327
        %v456 = vmax.f32 %v200, %v328
        %v457 = vmax.f32 %v201, %v329
        %v458 = vmax.f32 %v202, %v330
        %v459 = vmax.f32 %v203, %v331
        %v460 = vmax.f32 %v204, %v332
        %v461 = vmax.f32 %v205, %v333
        %v462 = vmax.f32 %v206, %v334
        %v463 = vmax.f32 %v207, %v335
        %v464 = vmax.f32 %v208, %v336
        %v465 = vmax.f32 %v209, %v337
        %v466 = vmax.f32 %v210, %v338
        %v467 = vmax.f32 %v211, %v339
        %v468 = vmax.f32 %v212, %v340
        %v469 = vmax.f32 %v213, %v341
        %v470 = vmax.f32 %v214, %v342
        %v471 = vmax.f32 %v215, %v343
        %v472 = vmax.f32 %v216, %v344
        %v473 = vmax.f32 %v217, %v345
        %v474 = vmax.f32 %v218, %v346
        %v475 = vmax.f32 %v219, %v347
        %v476 = vmax.f32 %v220, %v348
        %v477 = vmax.f32 %v221, %v349
        %v478 = vmax.f32 %v222, %v350
        %v479 = vmax.f32 %v223, %v351
        %v480 = vmax.f32 %v224, %v352
        %v481 = vmax.f32 %v225, %v353
        %v482 = vmax.f32 %v226, %v354
        %v483 = vmax.f32 %v227, %v355
        %v484 = vmax.f32 %v228, %v356
        %v485 = vmax.f32 %v229, %v357
        %v486 = vmax.f32 %v230, %v358
        %v487 = vmax.f32 %v231, %v359
        %v488 = vmax.f32 %v232, %v360
        %v489 = vmax.f32 %v233, %v361
        %v490 = vmax.f32 %v234, %v362
        %v491 = vmax.f32 %v235, %v363
        %v492 = vmax.f32 %v236, %v364
        %v493 = vmax.f32 %v237, %v365
        %v494 = vmax.f32 %v238, %v366
        %v495 = vmax.f32 %v239, %v367
        %v496 = vmax.f32 %v240, %v368
        %v497 = vmax.f32 %v241, %v369
        %v498 = vmax.f32 %v242, %v370
        %v499 = vmax.f32 %v243, %v371
        %v500 = vmax.f32 %v244, %v372
        %v501 = vmax.f32 %v245, %v373
        %v502 = vmax.f32 %v246, %v374
        %v503 = vmax.f32 %v247, %v375
        %v504 = vmax.f32 %v248, %v376
        %v505 = vmax.f32 %v249, %v377
        %v506 = vmax.f32 %v250, %v378
        %v507 = vmax.f32 %v251, %v379
        %v508 = vmax.f32 %v252, %v380
        %v509 = vmax.f32 %v253, %v381
        %v510 = vmax.f32 %v254, %v382
        %v511 = vmax.f32 %v255, %v383
        %v512 = vmax.f32 %v256, %v384
        %v513 = vmax.f32 %v257, %v385
        %v514 = vmax.f32 %v258, %v386
        %v515 = vmax.f32 %v259, %v387
        %v516 = vmax.f32 %v260, %v388
        %v517 = vmax.f32 %v261, %v389
        %v518 = vmax.f32 %v262, %v390
        %v519 = vmax.f32 %v263, %v391
        %v520 = vmax.f32 %v264, %v392
        %v521 = vmax.f32 %v265, %v393
        %522 = vst [vmem:[%s135] sm:$0xff] %v394
        %523 = vst [vmem:[%s135 + $0x8] sm:$0xff] %v395
        %524 = vst [vmem:[%s135 + $0x10] sm:$0xff] %v396
        %525 = vst [vmem:[%s135 + $0x18] sm:$0xff] %v397
        %526 = vst [vmem:[%s135 + $0x20] sm:$0xff] %v398
        %527 = vst [vmem:[%s135 + $0x28] sm:$0xff] %v399
        %528 = vst [vmem:[%s135 + $0x30] sm:$0xff] %v400
        %529 = vst [vmem:[%s135 + $0x38] sm:$0xff] %v401
        %530 = vst [vmem:[%s135 + $0x40] sm:$0xff] %v402
        %531 = vst [vmem:[%s135 + $0x48] sm:$0xff] %v403
        %532 = vst [vmem:[%s135 + $0x50] sm:$0xff] %v404
        %533 = vst [vmem:[%s135 + $0x58] sm:$0xff] %v405
        %534 = vst [vmem:[%s135 + $0x60] sm:$0xff] %v406
        %535 = vst [vmem:[%s135 + $0x68] sm:$0xff] %v407
        %536 = vst [vmem:[%s135 + $0x70] sm:$0xff] %v408
        %537 = vst [vmem:[%s135 + $0x78] sm:$0xff] %v409
        %538 = vst [vmem:[%s135 + $0x80] sm:$0xff] %v410
        %539 = vst [vmem:[%s135 + $0x88] sm:$0xff] %v411
        %540 = vst [vmem:[%s135 + $0x90] sm:$0xff] %v412
        %541 = vst [vmem:[%s135 + $0x98] sm:$0xff] %v413
        %542 = vst [vmem:[%s135 + $0xa0] sm:$0xff] %v414
        %543 = vst [vmem:[%s135 + $0xa8] sm:$0xff] %v415
        %544 = vst [vmem:[%s135 + $0xb0] sm:$0xff] %v416
        %545 = vst [vmem:[%s135 + $0xb8] sm:$0xff] %v417
        %546 = vst [vmem:[%s135 + $0xc0] sm:$0xff] %v418
        %547 = vst [vmem:[%s135 + $0xc8] sm:$0xff] %v419
        %548 = vst [vmem:[%s135 + $0xd0] sm:$0xff] %v420
        %549 = vst [vmem:[%s135 + $0xd8] sm:$0xff] %v421
        %550 = vst [vmem:[%s135 + $0xe0] sm:$0xff] %v422
        %551 = vst [vmem:[%s135 + $0xe8] sm:$0xff] %v423
        %552 = vst [vmem:[%s135 + $0xf0] sm:$0xff] %v424
        %553 = vst [vmem:[%s135 + $0xf8] sm:$0xff] %v425
        %554 = vst [vmem:[%s135 + $0x100] sm:$0xff] %v426
        %555 = vst [vmem:[%s135 + $0x108] sm:$0xff] %v427
        %556 = vst [vmem:[%s135 + $0x110] sm:$0xff] %v428
        %557 = vst [vmem:[%s135 + $0x118] sm:$0xff] %v429
        %558 = vst [vmem:[%s135 + $0x120] sm:$0xff] %v430
        %559 = vst [vmem:[%s135 + $0x128] sm:$0xff] %v431
        %560 = vst [vmem:[%s135 + $0x130] sm:$0xff] %v432
        %561 = vst [vmem:[%s135 + $0x138] sm:$0xff] %v433
        %562 = vst [vmem:[%s135 + $0x140] sm:$0xff] %v434
        %563 = vst [vmem:[%s135 + $0x148] sm:$0xff] %v435
        %564 = vst [vmem:[%s135 + $0x150] sm:$0xff] %v436
        %565 = vst [vmem:[%s135 + $0x158] sm:$0xff] %v437
        %566 = vst [vmem:[%s135 + $0x160] sm:$0xff] %v438
        %567 = vst [vmem:[%s135 + $0x168] sm:$0xff] %v439
        %568 = vst [vmem:[%s135 + $0x170] sm:$0xff] %v440
        %569 = vst [vmem:[%s135 + $0x178] sm:$0xff] %v441
        %570 = vst [vmem:[%s135 + $0x180] sm:$0xff] %v442
        %571 = vst [vmem:[%s135 + $0x188] sm:$0xff] %v443
        %572 = vst [vmem:[%s135 + $0x190] sm:$0xff] %v444
        %573 = vst [vmem:[%s135 + $0x198] sm:$0xff] %v445
        %574 = vst [vmem:[%s135 + $0x1a0] sm:$0xff] %v446
        %575 = vst [vmem:[%s135 + $0x1a8] sm:$0xff] %v447
        %576 = vst [vmem:[%s135 + $0x1b0] sm:$0xff] %v448
        %577 = vst [vmem:[%s135 + $0x1b8] sm:$0xff] %v449
        %578 = vst [vmem:[%s135 + $0x1c0] sm:$0xff] %v450
        %579 = vst [vmem:[%s135 + $0x1c8] sm:$0xff] %v451
        %580 = vst [vmem:[%s135 + $0x1d0] sm:$0xff] %v452
        %581 = vst [vmem:[%s135 + $0x1d8] sm:$0xff] %v453
        %582 = vst [vmem:[%s135 + $0x1e0] sm:$0xff] %v454
        %583 = vst [vmem:[%s135 + $0x1e8] sm:$0xff] %v455
        %584 = vst [vmem:[%s135 + $0x1f0] sm:$0xff] %v456
        %585 = vst [vmem:[%s135 + $0x1f8] sm:$0xff] %v457
        %586 = vst [vmem:[%s135 + $0x200] sm:$0xff] %v458
        %587 = vst [vmem:[%s135 + $0x208] sm:$0xff] %v459
        %588 = vst [vmem:[%s135 + $0x210] sm:$0xff] %v460
        %589 = vst [vmem:[%s135 + $0x218] sm:$0xff] %v461
        %590 = vst [vmem:[%s135 + $0x220] sm:$0xff] %v462
        %591 = vst [vmem:[%s135 + $0x228] sm:$0xff] %v463
        %592 = vst [vmem:[%s135 + $0x230] sm:$0xff] %v464
        %593 = vst [vmem:[%s135 + $0x238] sm:$0xff] %v465
        %594 = vst [vmem:[%s135 + $0x240] sm:$0xff] %v466
        %595 = vst [vmem:[%s135 + $0x248] sm:$0xff] %v467
        %596 = vst [vmem:[%s135 + $0x250] sm:$0xff] %v468
        %597 = vst [vmem:[%s135 + $0x258] sm:$0xff] %v469
        %598 = vst [vmem:[%s135 + $0x260] sm:$0xff] %v470
        %599 = vst [vmem:[%s135 + $0x268] sm:$0xff] %v471
        %600 = vst [vmem:[%s135 + $0x270] sm:$0xff] %v472
        %601 = vst [vmem:[%s135 + $0x278] sm:$0xff] %v473
        %602 = vst [vmem:[%s135 + $0x280] sm:$0xff] %v474
        %603 = vst [vmem:[%s135 + $0x288] sm:$0xff] %v475
        %604 = vst [vmem:[%s135 + $0x290] sm:$0xff] %v476
        %605 = vst [vmem:[%s135 + $0x298] sm:$0xff] %v477
        %606 = vst [vmem:[%s135 + $0x2a0] sm:$0xff] %v478
        %607 = vst [vmem:[%s135 + $0x2a8] sm:$0xff] %v479
        %608 = vst [vmem:[%s135 + $0x2b0] sm:$0xff] %v480
        %609 = vst [vmem:[%s135 + $0x2b8] sm:$0xff] %v481
        %610 = vst [vmem:[%s135 + $0x2c0] sm:$0xff] %v482
        %611 = vst [vmem:[%s135 + $0x2c8] sm:$0xff] %v483
        %612 = vst [vmem:[%s135 + $0x2d0] sm:$0xff] %v484
        %613 = vst [vmem:[%s135 + $0x2d8] sm:$0xff] %v485
        %614 = vst [vmem:[%s135 + $0x2e0] sm:$0xff] %v486
        %615 = vst [vmem:[%s135 + $0x2e8] sm:$0xff] %v487
        %616 = vst [vmem:[%s135 + $0x2f0] sm:$0xff] %v488
        %617 = vst [vmem:[%s135 + $0x2f8] sm:$0xff] %v489
        %618 = vst [vmem:[%s135 + $0x300] sm:$0xff] %v490
        %619 = vst [vmem:[%s135 + $0x308] sm:$0xff] %v491
        %620 = vst [vmem:[%s135 + $0x310] sm:$0xff] %v492
        %621 = vst [vmem:[%s135 + $0x318] sm:$0xff] %v493
        %622 = vst [vmem:[%s135 + $0x320] sm:$0xff] %v494
        %623 = vst [vmem:[%s135 + $0x328] sm:$0xff] %v495
        %624 = vst [vmem:[%s135 + $0x330] sm:$0xff] %v496
        %625 = vst [vmem:[%s135 + $0x338] sm:$0xff] %v497
        %626 = vst [vmem:[%s135 + $0x340] sm:$0xff] %v498
        %627 = vst [vmem:[%s135 + $0x348] sm:$0xff] %v499
        %628 = vst [vmem:[%s135 + $0x350] sm:$0xff] %v500
        %629 = vst [vmem:[%s135 + $0x358] sm:$0xff] %v501
        %630 = vst [vmem:[%s135 + $0x360] sm:$0xff] %v502
        %631 = vst [vmem:[%s135 + $0x368] sm:$0xff] %v503
        %632 = vst [vmem:[%s135 + $0x370] sm:$0xff] %v504
        %633 = vst [vmem:[%s135 + $0x378] sm:$0xff] %v505
        %634 = vst [vmem:[%s135 + $0x380] sm:$0xff] %v506
        %635 = vst [vmem:[%s135 + $0x388] sm:$0xff] %v507
        %636 = vst [vmem:[%s135 + $0x390] sm:$0xff] %v508
        %637 = vst [vmem:[%s135 + $0x398] sm:$0xff] %v509
        %638 = vst [vmem:[%s135 + $0x3a0] sm:$0xff] %v510
        %639 = vst [vmem:[%s135 + $0x3a8] sm:$0xff] %v511
        %640 = vst [vmem:[%s135 + $0x3b0] sm:$0xff] %v512
        %641 = vst [vmem:[%s135 + $0x3b8] sm:$0xff] %v513
        %642 = vst [vmem:[%s135 + $0x3c0] sm:$0xff] %v514
        %643 = vst [vmem:[%s135 + $0x3c8] sm:$0xff] %v515
        %644 = vst [vmem:[%s135 + $0x3d0] sm:$0xff] %v516
        %645 = vst [vmem:[%s135 + $0x3d8] sm:$0xff] %v517
        %646 = vst [vmem:[%s135 + $0x3e0] sm:$0xff] %v518
        %647 = vst [vmem:[%s135 + $0x3e8] sm:$0xff] %v519
        %648 = vst [vmem:[%s135 + $0x3f0] sm:$0xff] %v520
        %649 = vst [vmem:[%s135 + $0x3f8] sm:$0xff] %v521
        %s650 = sand.u32 %s52, 1
        %s651 = scalar_lea.sflag [#allocation4], %s650
        %s652 = sand.u32 %s52, 1
        %s653 = smul.addr %s652, 1024
        %s654 = scalar_lea.vmem [#allocation5], %s653
        // Predicated region
        $region29: #{tpu_custom_call.1} parent=23 // pred_check
          %p655 = pneg %p62
        $region30: #{tpu_custom_call.1} parent=23 // pred_check_branch
          %657 = sbr.rel (%p655) target = $region32
        $region31: #{tpu_custom_call.1} parent=23 // pred_region
          %s658 = smul.u32 8, %s18
          %s660 = ssub.s32 16384, 16384
          %661 = vsyncadd %s651, %s660
          %s662 = smul.addr %s658, 16
          %s663 = smul.addr %s662, 128
          %s664 = scalar_lea.hbm %s1, %s663
          %s665 = sshll.u32 %s654, 4
          %s666 = int_to_ptr.vmem [resolvable:$true] %s665
          %671 = dma.vmem_to_hbm [thread:$0]  %s666, 16384, %s664, %s651, 2048, 2048, 128
        $region32: #{tpu_custom_call.1} parent=23 // pred_fallthru
          _
      $region24: #{tpu_custom_call.1} parent=5 // pred_fallthru
        _
      %p672 = scmp.le.s32.totalorder 2, %s13
      // Predicated region
      $region33: #{tpu_custom_call.1} parent=5 // pred_check
        %p673 = pneg %p672
      $region34: #{tpu_custom_call.1} parent=5 // pred_check_branch
        %675 = sbr.rel (%p673) target = $region36
      $region35: #{tpu_custom_call.1} parent=5 // pred_region
        %s676 = ssub.s32 %s13, 2
        // Predicated region
        $region37: #{tpu_custom_call.1} parent=35 // pred_check
          %p677 = pneg %p68
        $region38: #{tpu_custom_call.1} parent=35 // pred_check_branch
          %679 = sbr.rel (%p677) target = $region40
        $region39: #{tpu_custom_call.1} parent=35 // pred_region
          %s680 = sand.u32 %s53, 1
          %s681 = scalar_lea.sflag [#allocation4], %s680
          %s682 = sand.u32 %s53, 1
          %s683 = smul.addr %s682, 1024
          %s684 = scalar_lea.vmem [#allocation5], %s683
          %685 = dma.done %s681, 16384
        $region40: #{tpu_custom_call.1} parent=35 // pred_fallthru
          _
      $region36: #{tpu_custom_call.1} parent=5 // pred_fallthru
        _
    $region6: #{tpu_custom_call.1} parent=1 // loop_footer
      %s17 = sadd.s32 1, %s13
    $region7: #{tpu_custom_call.1} parent=1 // loop_footer_branch
      %12 = sbr.rel target = $region3
    $region8: #{tpu_custom_call.1} parent=1 // loop_exit
      _
    %686 = vsyncpa [#allocation3], 1
    %s687 = scalar_lea.sflag [#allocation3], 1
    %688 = vsyncpa %s687, 1
    %689 = vsyncpa [#allocation4], 1
    %s690 = scalar_lea.sflag [#allocation4], 1
    %691 = vsyncpa %s690, 1

</llo_original>
